<compile_context>
chip_gen: v7x
topology: tpu7x:2x2x1
jax: 0.10.0
libtpu: 0.0.40
codegen_flags: <defaults>
</compile_context>

<pallas_src>
import functools

import jax
import jax.numpy as jnp
from jax.experimental import pallas as pl
from jax.experimental.pallas import tpu as pltpu


def _round_up(n, m):
    return ((n + m - 1) // m) * m


def _linear_kernel(x_ref, w_ref, b_ref, o_ref, *, features, block_k):
    """Grid point (i, k): accumulate x[i-tile] . w over the K (feature) axis.

    x_ref: (tile_b, block_k)      feature tile (last K block may be ragged)
    w_ref: (nk, out_dim, block_k) full weight, VMEM-resident (constant index)
    b_ref: (1, out_dim)           bias (resident)
    o_ref: (tile_b, out_dim)      output tile; resident across k -> accumulator
    """
    k = pl.program_id(1)
    nk = pl.num_programs(1)
    out_dim = o_ref.shape[-1]

    @pl.when(k == 0)
    def _():
        o_ref[...] = jnp.broadcast_to(b_ref[...], o_ref.shape).astype(jnp.float32)

    def accumulate(x):
        w = w_ref[k]                            # (out_dim, block_k), resident
        if out_dim == 1:
            # VPU multiply (sublane broadcast of the weight row) + lane reduce.
            o_ref[...] += jnp.sum(x * w, axis=-1, keepdims=True)
        else:
            # out_dim is static and tiny (== 2): one reduce per output column,
            # scattered into its lane with a select (no lane-sliced stores).
            lane = jax.lax.broadcasted_iota(jnp.int32, o_ref.shape, 1)
            contrib = jnp.zeros(o_ref.shape, jnp.float32)
            for o in range(out_dim):
                col = jnp.sum(x * w[o:o + 1, :], axis=-1, keepdims=True)
                contrib = contrib + jnp.where(lane == o, col, 0.0)
            o_ref[...] += contrib

    rem = features % block_k                    # static Python int
    if rem == 0:
        accumulate(x_ref[...])
    else:
        @pl.when(k < nk - 1)
        def _():
            accumulate(x_ref[...])

        @pl.when(k == nk - 1)
        def _():
            # Ragged tail: columns >= rem in this block are unspecified (the
            # DMA is clamped to F); zero them explicitly before the multiply.
            lane = jax.lax.broadcasted_iota(jnp.int32, x_ref.shape, 1)
            accumulate(jnp.where(lane < rem, x_ref[...], 0.0))


@functools.partial(jax.jit, static_argnames=("tile_b", "block_k"))
def linear_forward(x, w, b, *, tile_b, block_k):
    """Computes x @ w.T + b with a Pallas TPU kernel.

    Args:
      x: (B, F) float32 features (never copied/padded).
      w: (O, F) float32 weight (PyTorch layout; O is 1 or 2).
      b: (1, O) float32 bias.
      tile_b:  batch tile (multiple of 8, or == B for tiny batches).
      block_k: feature tile (multiple of 128, or == F for a single K step).

    Returns:
      (B, O) float32.
    """
    B, F = x.shape
    O = w.shape[0]

    nk = -(-F // block_k)                        # K grid extent
    f_pad = nk * block_k
    if f_pad != F:                               # pad only the tiny weight
        w = jnp.pad(w, ((0, 0), (0, f_pad - F)))
    w_r = w.reshape(O, nk, block_k).transpose(1, 0, 2)   # (nk, O, block_k)

    grid = (-(-B // tile_b), nk)
    kernel = functools.partial(_linear_kernel, features=F, block_k=block_k)

    return pl.pallas_call(
        kernel,
        out_shape=jax.ShapeDtypeStruct((B, O), jnp.float32),
        grid_spec=pltpu.PrefetchScalarGridSpec(
            num_scalar_prefetch=0,
            grid=grid,
            in_specs=[
                pl.BlockSpec((tile_b, block_k), lambda i, k: (i, k)),   # x tile
                pl.BlockSpec((nk, O, block_k), lambda i, k: (0, 0, 0)),  # resident w
                pl.BlockSpec((1, O), lambda i, k: (0, 0)),               # resident bias
            ],
            out_specs=pl.BlockSpec((tile_b, O), lambda i, k: (i, 0)),
        ),
        compiler_params=pltpu.CompilerParams(
            # Batch tiles are independent (megacore-parallel on v7x);
            # K is the reduction axis (innermost, "arbitrary").
            dimension_semantics=("parallel", "arbitrary"),
            vmem_limit_bytes=48 * 1024 * 1024,
        ),
        cost_estimate=pl.CostEstimate(
            flops=2 * B * F * O,
            transcendentals=0,
            bytes_accessed=4 * (B * F + O * f_pad + B * O),
        ),
    )(x, w_r, b)


def _choose_tiles(batch, features):
    """Pick (tile_b, block_k): ~8 MiB x tile per buffer, >=2 batch tiles when possible."""
    if batch < 16:
        tile_b = batch                                   # full-extent block (exempt)
    else:
        tile_b = min(512, _round_up((batch + 1) // 2, 8))  # grid[0] >= 2 (megacore)
    block_k = (8 * 1024 * 1024) // (4 * tile_b)          # K elems per step
    if block_k >= features:
        block_k = features                               # single K step, no padding
    else:
        block_k = max(128, (block_k // 128) * 128)
    return tile_b, block_k


class LinearRegressionLandscapeModelPallas:
    """JAX/Pallas port of LinearRegressionLandscapeModel."""

    DEFAULT_HPARAMS = {"num_features": 20000, "predict_variance": False}

    def __init__(self, hparams=None, *, key=None):
        merged = dict(self.DEFAULT_HPARAMS)
        if hparams:
            merged.update(hparams)
        self.hparams = merged

        num_features = merged["num_features"]
        output_dim = 2 if merged["predict_variance"] else 1

        # Deterministic init mirroring nn.Linear's uniform(-1/sqrt(F), 1/sqrt(F)).
        key = jax.random.PRNGKey(42) if key is None else key
        kw, kb = jax.random.split(key)
        bound = 1.0 / float(num_features) ** 0.5
        # Weight kept in the PyTorch (O, F) layout; the wrapper reshapes the
        # (tiny) weight, never the activations.
        self.w = jax.random.uniform(
            kw, (output_dim, num_features), jnp.float32, -bound, bound
        )
        self.b = jax.random.uniform(kb, (1, output_dim), jnp.float32, -bound, bound)

    def __call__(self, x):
        x2d = x.reshape(x.shape[0], -1).astype(jnp.float32)
        B, F = x2d.shape
        tile_b, block_k = _choose_tiles(B, F)
        out = linear_forward(x2d, self.w, self.b, tile_b=tile_b, block_k=block_k)
        if self.hparams["predict_variance"]:
            return out[:, 0], out[:, 1]
        return jnp.squeeze(out)   # (B,) for output_dim == 1 (matches .squeeze())


if __name__ == "__main__":
    # Small shapes consistent with the module: batch=4, 8*64 = 512 features.
    B = 4
    x = jax.random.normal(jax.random.PRNGKey(0), (B, 8, 64), jnp.float32)
    F = 8 * 64
    x2d = x.reshape(B, -1)

    # output_dim == 1 (default)
    model = LinearRegressionLandscapeModelPallas(
        {"num_features": F, "predict_variance": False}, key=jax.random.PRNGKey(1)
    )
    out = jax.block_until_ready(model(x))
    ref = jnp.squeeze(
        jnp.einsum("bf,of->bo", x2d, model.w,
                   precision=jax.lax.Precision.HIGHEST) + model.b
    )
    assert out.shape == (B,), out.shape
    assert jnp.allclose(out, ref, atol=1e-3, rtol=1e-3), (out, ref)

    # output_dim == 2 (predict_variance=True) -> (mean, variance) tuple
    model2 = LinearRegressionLandscapeModelPallas(
        {"num_features": F, "predict_variance": True}, key=jax.random.PRNGKey(2)
    )
    mean, var = model2(x)
    mean = jax.block_until_ready(mean)
    var = jax.block_until_ready(var)
    ref2 = jnp.einsum("bf,of->bo", x2d, model2.w,
                      precision=jax.lax.Precision.HIGHEST) + model2.b
    assert mean.shape == (B,) and var.shape == (B,)
    assert jnp.allclose(mean, ref2[:, 0], atol=1e-3, rtol=1e-3)
    assert jnp.allclose(var, ref2[:, 1], atol=1e-3, rtol=1e-3)

    # Ragged-tile path: B not a multiple of tile_b, F not a multiple of block_k
    # (exercises the in-kernel K-tail mask and partial batch blocks).
    kx, kw_, kb_ = jax.random.split(jax.random.PRNGKey(3), 3)
    Br, Fr, Or_ = 20, 300, 2
    xr = jax.random.normal(kx, (Br, Fr), jnp.float32)
    wr = jax.random.normal(kw_, (Or_, Fr), jnp.float32) * 0.05
    br = jax.random.normal(kb_, (1, Or_), jnp.float32)
    outr = jax.block_until_ready(
        linear_forward(xr, wr, br, tile_b=16, block_k=128)
    )
    refr = jnp.einsum("bf,of->bo", xr, wr,
                      precision=jax.lax.Precision.HIGHEST) + br
    assert outr.shape == (Br, Or_)
    assert jnp.allclose(outr, refr, atol=1e-3, rtol=1e-3), (outr, refr)

    print("KERNEL_OK")
</pallas_src>

<mosaic_0001>
module attributes {stable_mosaic.version = 11 : i64} {
  func.func @_linear_kernel(%arg0: i32, %arg1: i32, %arg2: memref<4x512xf32, #tpu.memory_space<vmem>>, %arg3: memref<1x1x512xf32, #tpu.memory_space<vmem>>, %arg4: memref<1x1xf32, #tpu.memory_space<vmem>>, %arg5: memref<4x1xf32, #tpu.memory_space<vmem>>) attributes {dimension_semantics = [#tpu.dimension_semantics<parallel>, #tpu.dimension_semantics<arbitrary>], iteration_bounds = array<i64: 1, 1>, scalar_prefetch = 0 : i64, scratch_operands = 0 : i64, tpu.core_type = #tpu.core_type<tc>, window_params = [{transform_indices = @transform_0, window_bounds = array<i64: 4, 512>}, {pipeline_mode = #tpu.pipeline_mode<synchronous>, transform_indices = @transform_1, window_bounds = array<i64: 1, 1, 512>}, {pipeline_mode = #tpu.pipeline_mode<synchronous>, transform_indices = @transform_2, window_bounds = array<i64: 1, 1>}, {transform_indices = @transform_3, window_bounds = array<i64: 4, 1>}]} {
    %c0_i32 = arith.constant 0 : i32
    %0 = arith.cmpi eq, %arg1, %c0_i32 : i32
    %1 = arith.extui %0 : i1 to i32
    %c0_i32_0 = arith.constant 0 : i32
    %2 = arith.cmpi ne, %1, %c0_i32_0 : i32
    scf.if %2 {
      %c0_8 = arith.constant 0 : index
      %c0_9 = arith.constant 0 : index
      %14 = vector.load %arg4[%c0_8, %c0_9] : memref<1x1xf32, #tpu.memory_space<vmem>>, vector<1x1xf32>
      %15 = vector.shape_cast %14 : vector<1x1xf32> to vector<1x1xf32>
      %16 = vector.broadcast %15 : vector<1x1xf32> to vector<4x1xf32>
      %c0_10 = arith.constant 0 : index
      %c0_11 = arith.constant 0 : index
      %17 = vector.load %arg5[%c0_10, %c0_11] : memref<4x1xf32, #tpu.memory_space<vmem>>, vector<4x1xf32>
      tpu.vector_store %arg5[%c0_10, %c0_11], %16 {strides = array<i32>} : memref<4x1xf32, #tpu.memory_space<vmem>>, vector<4x1xf32>,
    } else {
    }
    %c0 = arith.constant 0 : index
    %c0_1 = arith.constant 0 : index
    %3 = vector.load %arg2[%c0, %c0_1] : memref<4x512xf32, #tpu.memory_space<vmem>>, vector<4x512xf32>
    %4 = arith.index_cast %arg1 : i32 to index
    %c0_2 = arith.constant 0 : index
    %c0_3 = arith.constant 0 : index
    %5 = vector.load %arg3[%4, %c0_2, %c0_3] : memref<1x1x512xf32, #tpu.memory_space<vmem>>, vector<1x1x512xf32>
    %6 = vector.shape_cast %5 : vector<1x1x512xf32> to vector<1x512xf32>
    %c0_4 = arith.constant 0 : index
    %c0_5 = arith.constant 0 : index
    %7 = vector.load %arg5[%c0_4, %c0_5] : memref<4x1xf32, #tpu.memory_space<vmem>>, vector<4x1xf32>
    %8 = vector.broadcast %6 : vector<1x512xf32> to vector<4x512xf32>
    %9 = arith.mulf %3, %8 : vector<4x512xf32>
    %cst = arith.constant dense<0.000000e+00> : vector<4xf32>
    %10 = vector.multi_reduction <add>, %9, %cst [1] : vector<4x512xf32> to vector<4xf32>
    %11 = vector.shape_cast %10 : vector<4xf32> to vector<4x1xf32>
    %12 = arith.addf %7, %11 : vector<4x1xf32>
    %c0_6 = arith.constant 0 : index
    %c0_7 = arith.constant 0 : index
    %13 = vector.load %arg5[%c0_6, %c0_7] : memref<4x1xf32, #tpu.memory_space<vmem>>, vector<4x1xf32>
    tpu.vector_store %arg5[%c0_6, %c0_7], %12 {strides = array<i32>} : memref<4x1xf32, #tpu.memory_space<vmem>>, vector<4x1xf32>,
    return
  }
  func.func @transform_0(%arg0: i32, %arg1: i32) -> (i32, i32) {
    %c0_i32 = arith.constant 0 : i32
    return %arg0, %arg1 : i32, i32
  }
  func.func @transform_1(%arg0: i32, %arg1: i32) -> (i32, i32, i32) {
    %c0_i32 = arith.constant 0 : i32
    %c0_i32_0 = arith.constant 0 : i32
    %c0_i32_1 = arith.constant 0 : i32
    %c0_i32_2 = arith.constant 0 : i32
    return %c0_i32, %c0_i32_0, %c0_i32_1 : i32, i32, i32
  }
  func.func @transform_2(%arg0: i32, %arg1: i32) -> (i32, i32) {
    %c0_i32 = arith.constant 0 : i32
    %c0_i32_0 = arith.constant 0 : i32
    %c0_i32_1 = arith.constant 0 : i32
    return %c0_i32, %c0_i32_0 : i32, i32
  }
  func.func @transform_3(%arg0: i32, %arg1: i32) -> (i32, i32) {
    %c0_i32 = arith.constant 0 : i32
    %c0_i32_0 = arith.constant 0 : i32
    return %arg0, %c0_i32 : i32, i32
  }
}

</mosaic_0001>

<llo_original>
// kernel: linear_forward.1
$region0: #{linear_forward.1}
  #allocation0 [shape = 'u32[]', space=smem, size = 0x4, offset = 0x4, fixed_abs, tag = 'smem constant byte address 0x4 - core index']
  #allocation1 [shape = 'u32[144,128]{1,0:T(1,128)}', space=vmem, size = 0x12000, scoped, tag = 'internal scratch']
  #allocation2 [shape = 'f32[1,1]{1,0:T(1,128)S(1)}', space=vmem, size = 0x200, scoped, tag = 'scoped memory for linear_forward.1']
  %s0 = inlined_call_operand.hbm [shape: f32[4,512], index: 0, kind: input, shape index: {}]
  %s1 = inlined_call_operand.vmem [shape: f32[1,1,512], index: 1, kind: input, shape index: {}]
  %s2 = inlined_call_operand.<no memory space> [shape: f32[1,1], index: 2, kind: input, shape index: {}]
  %s3 = inlined_call_operand.vmem [shape: f32[4,1], index: 3, kind: output, shape index: {}]
  %s4 = sld [smem:[#allocation0]]
  $region30: #{linear_forward.1} parent=0
    _
  %s6 = ssub.s32 1, %s4
  %s7 = scalar_select 0, %s6, %s4
  %v8 = vstv %s2
  %9 = vst [vmem:[#allocation2] sm:$0x1] %v8
  $region1: #{linear_forward.1} parent=0
    #allocation3 [shape = 'u8[8192]{0}', space=vmem, size = 0x2000, scoped, tag = 'input window, operand 0, single buffered']
    #allocation4 [shape = 's32[1]{0}', space=sflag, size = 0x4, scoped, tag = 'scoped memory for linear_forward.1']
    %10 = vsyncpa [#allocation4], 0
    // Predicated region
    $region2: #{linear_forward.1} parent=1 // pred_check
      _
    $region3: #{linear_forward.1} parent=1 // pred_check_branch
      %12 = sbr.rel (0) target = $region5
    $region4: #{linear_forward.1} parent=1 // pred_region
      %s14 = ssub.s32 256, 256
      %15 = vsyncadd [#allocation4], %s14
      %s17 = sshll.u32 [#allocation3], 4
      %s18 = int_to_ptr.vmem [resolvable:$true] %s17
      %20 = dma.hbm_to_vmem [thread:$0]  %s0, 256, %s18, [#allocation4]
    $region5: #{linear_forward.1} parent=1 // pred_fallthru
      _
    // Predicated region
    $region6: #{linear_forward.1} parent=1 // pred_check
      _
    $region7: #{linear_forward.1} parent=1 // pred_check_branch
      %22 = sbr.rel (0) target = $region9
    $region8: #{linear_forward.1} parent=1 // pred_region
      _
    $region9: #{linear_forward.1} parent=1 // pred_fallthru
      _
    // Predicated region
    $region10: #{linear_forward.1} parent=1 // pred_check
      _
    $region11: #{linear_forward.1} parent=1 // pred_check_branch
      %24 = sbr.rel (0) target = $region13
    $region12: #{linear_forward.1} parent=1 // pred_region
      _
    $region13: #{linear_forward.1} parent=1 // pred_fallthru
      _
    // Predicated region
    $region14: #{linear_forward.1} parent=1 // pred_check
      _
    $region15: #{linear_forward.1} parent=1 // pred_check_branch
      %26 = sbr.rel (0) target = $region17
    $region16: #{linear_forward.1} parent=1 // pred_region
      %27 = dma.done [#allocation4], 256
    $region17: #{linear_forward.1} parent=1 // pred_fallthru
      _
    %p28 = scmp.eq.s32.totalorder 0, 0
    // Predicated region
    $region18: #{linear_forward.1} parent=1 // pred_check
      %p29 = pneg %p28
    $region19: #{linear_forward.1} parent=1 // pred_check_branch
      %31 = sbr.rel (%p29) target = $region21
    $region20: #{linear_forward.1} parent=1 // pred_region
      %v32 = vld [vmem:[#allocation2] sm:$0x1]
      %v34 = vlaneseq
      %v35 = vshrl.u32 %v34, 7
      %v36 = vsub.s32 0, %v35
      %v37 = vrot.slane %v32, %v36
      %vm39 = vcmask 3072
      %40 = vst.msk [vmem:[%s3] sm:$0xf] %vm39, %v37
    $region21: #{linear_forward.1} parent=1 // pred_fallthru
      _
    %v41 = vld [vmem:[#allocation3] sm:$0xff]
    %v42 = vld [vmem:[#allocation3 + $0x8] sm:$0xff]
    %s43 = smul.u32 0, 4
    %s44 = scalar_lea.vmem %s1, %s43
    %v45 = vld [vmem:[%s44] sm:$0xf]
    %v46 = vld [vmem:[%s3] sm:$0xf]
    %v48 = vlaneseq
    %v49 = vshrl.u32 %v48, 7
    %v50 = vsub.s32 0, %v49
    %v51 = vrot.slane %v45, %v50
    %v52 = vlaneseq
    %v53 = vshrl.u32 %v52, 7
    %v54 = vsub.s32 1, %v53
    %v55 = vrot.slane %v45, %v54
    %v56 = vlaneseq
    %v57 = vshrl.u32 %v56, 7
    %v58 = vsub.s32 2, %v57
    %v59 = vrot.slane %v45, %v58
    %v60 = vlaneseq
    %v61 = vshrl.u32 %v60, 7
    %v62 = vsub.s32 3, %v61
    %v63 = vrot.slane %v45, %v62
    %v64 = vcombine.low %v51, %v55
    %v65 = vcombine.low %v59, %v63
    %v68 = vmul.f32 %v41, %v64
    %v69 = vmul.f32 %v42, %v65
    %v72 = vcombine.high %v68, %v68
    %v73 = vcombine.high %v69, %v69
    %vm76 = vcmask 1043456
    %v77 = vsel %vm76, %v68, 0.0
    %v78 = vsel %vm76, %v72, 0.0
    %v79 = vadd.f32 %v77, %v78
    %v80 = vsel %vm76, %v69, 0.0
    %v81 = vadd.f32 %v79, %v80
    %v82 = vsel %vm76, %v73, 0.0
    %v83 = vadd.f32 %v81, %v82
    %84 = vadd.xlane.f32.xlu0 %v83
    %v85 = vpop.xlane.xlu0 %84
    %v86 = vadd.f32 %v46, %v85
    %vm87 = vcmask 3072
    %88 = vst.msk [vmem:[%s3] sm:$0xf] %vm87, %v86
    // Predicated region
    $region22: #{linear_forward.1} parent=1 // pred_check
      _
    $region23: #{linear_forward.1} parent=1 // pred_check_branch
      %90 = sbr.rel (0) target = $region25
    $region24: #{linear_forward.1} parent=1 // pred_region
      _
    $region25: #{linear_forward.1} parent=1 // pred_fallthru
      _
    // Predicated region
    $region26: #{linear_forward.1} parent=1 // pred_check
      _
    $region27: #{linear_forward.1} parent=1 // pred_check_branch
      %92 = sbr.rel (0) target = $region29
    $region28: #{linear_forward.1} parent=1 // pred_region
      _
    $region29: #{linear_forward.1} parent=1 // pred_fallthru
      _
    %93 = vsyncpa [#allocation4], 1

</llo_original>
